<compile_context>
chip_gen: v7x
topology: tpu7x:2x2x1
jax: 0.10.0
libtpu: 0.0.40
codegen_flags: <defaults>
</compile_context>

<pallas_src>
import jax
import jax.numpy as jnp
from jax import lax
from jax.experimental import pallas as pl
from jax.experimental.pallas import tpu as pltpu

IN_FEATURES = 8
HIDDEN = 50
HIDDEN_PAD = 128      # pad hidden width to a full 128-lane vreg / MXU N dim
OUT_FEATURES = 1
W4_ROWS = 8           # fc4 weight padded to 8 sublane rows (row 0 is real)


def _round_up(x, m):
    return (x + m - 1) // m * m


def _pick_tile_b(B, tile_b, *, min_steps=4, min_tile=256):
    """Batch-tile rows: multiple of 8, <= padded batch, and (when the batch is
    large enough) small enough to leave >= min_steps grid steps so both v7x
    TensorCores get work under dimension_semantics=("parallel",)."""
    Bp8 = _round_up(max(B, 1), 8)
    t = min(tile_b, Bp8)
    while t >= 2 * min_tile and (Bp8 + t - 1) // t < min_steps:
        t //= 2
    return max(8, _round_up(t, 8))


def mlp_kernel(x_ref,
               w1_ref, b1_ref,
               w2_ref, b2_ref,
               w3_ref, b3_ref,
               w4_ref, b4_ref,
               o_ref):
    # One batch tile per grid step.  Weights/biases have constant index_maps so
    # they are DMA'd once and stay VMEM-resident across the whole grid.
    # x arrives as f32; cast to bf16 on the VPU (plenty of slack) instead of
    # paying a separate wrapper-side XLA cast pass over x in HBM.
    x = x_ref[...].astype(jnp.bfloat16)            # (TB, 8) bf16

    b1 = b1_ref[...]                               # (1, 128) f32 (padded cols 0)
    b2 = b2_ref[...]
    b3 = b3_ref[...]

    # bf16 MXU operands, f32 accumulation; bias add / ReLU stay f32 on the VPU.
    h = jnp.dot(x, w1_ref[...], preferred_element_type=jnp.float32) + b1
    h = jnp.maximum(h, 0.0).astype(jnp.bfloat16)

    h = jnp.dot(h, w2_ref[...], preferred_element_type=jnp.float32) + b2
    h = jnp.maximum(h, 0.0).astype(jnp.bfloat16)

    h = jnp.dot(h, w3_ref[...], preferred_element_type=jnp.float32) + b3
    h = jnp.maximum(h, 0.0).astype(jnp.bfloat16)   # (TB, 128) bf16

    # Final layer, packed batch-into-lanes:
    #   w4 (8, 128) contracted with h (TB, 128) on the hidden dim -> (8, TB).
    # Only row 0 of w4 is real (rows 1..7 are zero padding for sublane
    # alignment); slice it out, add the scalar bias, store lane-dense.
    y = lax.dot_general(
        w4_ref[...], h,
        dimension_numbers=(((1,), (1,)), ((), ())),
        preferred_element_type=jnp.float32)        # (8, TB) f32
    out_row = y[0:1, :] + b4_ref[0, 0]             # (1, TB) f32
    o_ref[...] = out_row.reshape(o_ref.shape)      # (1, 1, TB) lane-dense store


def mlp_forward(x, kparams, *, tile_b=4096):
    """x: (B, 8) float32. kparams: padded kernel params from prepare_params()."""
    B = x.shape[0]
    tb = _pick_tile_b(B, tile_b)
    Bp = _round_up(max(B, 1), tb)
    x = x.astype(jnp.float32)
    if Bp != B:
        x = jnp.pad(x, ((0, Bp - B), (0, 0)))      # only when the batch is ragged

    num_tiles = Bp // tb
    grid = (num_tiles,)

    def const2d(i):
        return (0, 0)

    in_specs = [
        pl.BlockSpec((tb, IN_FEATURES), lambda i: (i, 0)),            # x tile
        pl.BlockSpec((IN_FEATURES, HIDDEN_PAD), const2d),             # w1
        pl.BlockSpec((1, HIDDEN_PAD), const2d),                       # b1
        pl.BlockSpec((HIDDEN_PAD, HIDDEN_PAD), const2d),              # w2
        pl.BlockSpec((1, HIDDEN_PAD), const2d),                       # b2
        pl.BlockSpec((HIDDEN_PAD, HIDDEN_PAD), const2d),              # w3
        pl.BlockSpec((1, HIDDEN_PAD), const2d),                       # b3
        pl.BlockSpec((W4_ROWS, HIDDEN_PAD), const2d),                 # w4
        pl.BlockSpec(memory_space=pltpu.MemorySpace.SMEM),            # b4 scalar
    ]
    out_specs = pl.BlockSpec((1, 1, tb), lambda i: (i, 0, 0))
    out_shape = jax.ShapeDtypeStruct((num_tiles, 1, tb), jnp.float32)

    weight_bytes = sum(int(v.size) * v.dtype.itemsize for v in kparams.values())
    flops = (2 * Bp * HIDDEN_PAD * (IN_FEATURES + 2 * HIDDEN_PAD + W4_ROWS)
             + 7 * Bp * HIDDEN_PAD)                # matmuls + bias/ReLU
    bytes_accessed = Bp * IN_FEATURES * 4 + Bp * 4 + weight_bytes

    out = pl.pallas_call(
        mlp_kernel,
        out_shape=out_shape,
        grid=grid,
        in_specs=in_specs,
        out_specs=out_specs,
        compiler_params=pltpu.CompilerParams(
            dimension_semantics=("parallel",),
            vmem_limit_bytes=32 * 1024 * 1024),
        cost_estimate=pl.CostEstimate(
            flops=int(flops), transcendentals=0,
            bytes_accessed=int(bytes_accessed)),
    )(x,
      kparams["w1"], kparams["b1"],
      kparams["w2"], kparams["b2"],
      kparams["w3"], kparams["b3"],
      kparams["w4"], kparams["b4"])

    # (num_tiles, 1, tb) f32, batch-major contiguous -> (B, 1). Tiny slice only.
    return out.reshape(-1)[:B].reshape(B, OUT_FEATURES)


def init_torch_params(key):
    """PyTorch nn.Linear layout: weight (out, in), bias (out,), U(+-1/sqrt(in))."""
    dims = [(IN_FEATURES, HIDDEN), (HIDDEN, HIDDEN),
            (HIDDEN, HIDDEN), (HIDDEN, OUT_FEATURES)]
    params = {}
    keys = jax.random.split(key, 2 * len(dims))
    for i, (din, dout) in enumerate(dims):
        kw, kb = keys[2 * i], keys[2 * i + 1]
        bound = 1.0 / (din ** 0.5)
        params[f"w{i+1}"] = jax.random.uniform(kw, (dout, din), jnp.float32, -bound, bound)
        params[f"b{i+1}"] = jax.random.uniform(kb, (dout,), jnp.float32, -bound, bound)
    return params


def prepare_params(tp):
    """Pad to 128 lanes; layers 1-3 transposed to (in, out); fc4 kept (out, in)
    and padded to (8, 128) rows; weights bf16, biases f32, b4 as SMEM scalar."""
    def pad_w(w, k_pad, n_pad):
        k, n = w.shape
        out = jnp.zeros((k_pad, n_pad), jnp.float32).at[:k, :n].set(w)
        return out.astype(jnp.bfloat16)

    def pad_b(b, n_pad):
        n = b.shape[0]
        return jnp.zeros((1, n_pad), jnp.float32).at[0, :n].set(b)

    return {
        "w1": pad_w(tp["w1"].T, IN_FEATURES, HIDDEN_PAD), "b1": pad_b(tp["b1"], HIDDEN_PAD),
        "w2": pad_w(tp["w2"].T, HIDDEN_PAD, HIDDEN_PAD),  "b2": pad_b(tp["b2"], HIDDEN_PAD),
        "w3": pad_w(tp["w3"].T, HIDDEN_PAD, HIDDEN_PAD),  "b3": pad_b(tp["b3"], HIDDEN_PAD),
        # fc4.weight is (1, 50): keep (out, in) layout, pad to (8, 128); row 0 real.
        "w4": pad_w(tp["w4"], W4_ROWS, HIDDEN_PAD),
        "b4": tp["b4"].reshape(1, 1).astype(jnp.float32),
    }


def mlp_reference_f32(x, tp):
    h = jnp.maximum(x @ tp["w1"].T + tp["b1"], 0.0)
    h = jnp.maximum(h @ tp["w2"].T + tp["b2"], 0.0)
    h = jnp.maximum(h @ tp["w3"].T + tp["b3"], 0.0)
    return h @ tp["w4"].T + tp["b4"]


def mlp_reference_bf16(x, tp):
    """Mimics the kernel's numerics: bf16 operands, f32 accumulation / bias / ReLU."""
    hp = jax.lax.Precision.HIGHEST

    def rt(a):  # round-trip through bf16
        return a.astype(jnp.bfloat16).astype(jnp.float32)

    h = rt(x)
    for i in (1, 2, 3):
        h = jnp.dot(h, rt(tp[f"w{i}"].T), precision=hp) + tp[f"b{i}"]
        h = rt(jnp.maximum(h, 0.0))
    return jnp.dot(h, rt(tp["w4"].T), precision=hp) + tp["b4"]


if __name__ == "__main__":
    key = jax.random.PRNGKey(0)
    k_param, k_x = jax.random.split(key)

    torch_params = init_torch_params(k_param)
    kernel_params = prepare_params(torch_params)

    # Small deterministic input: batch=8, in_features=8.
    x = jax.random.normal(k_x, (8, IN_FEATURES), jnp.float32)

    out = mlp_forward(x, kernel_params)
    out = jax.block_until_ready(out)
    assert out.shape == (8, 1), out.shape

    ref_bf16 = mlp_reference_bf16(x, torch_params)   # same numerics as kernel
    ref_f32 = mlp_reference_f32(x, torch_params)     # pure f32 semantics check
    assert jnp.allclose(out, ref_bf16, atol=1e-4, rtol=1e-4), (out, ref_bf16)
    assert jnp.allclose(out, ref_f32, atol=1e-1, rtol=1e-1), (out, ref_f32)

    # Exercise a real multi-step grid (batch not a multiple of the tile).
    xb = jax.random.normal(jax.random.PRNGKey(1), (300, IN_FEATURES), jnp.float32)
    outb = jax.block_until_ready(mlp_forward(xb, kernel_params, tile_b=128))
    refb = mlp_reference_bf16(xb, torch_params)
    assert outb.shape == (300, 1), outb.shape
    assert jnp.allclose(outb, refb, atol=1e-4, rtol=1e-4)

    # Exercise the default large-tile path with the >=4-step cap logic.
    xc = jax.random.normal(jax.random.PRNGKey(2), (4100, IN_FEATURES), jnp.float32)
    outc = jax.block_until_ready(mlp_forward(xc, kernel_params))
    refc = mlp_reference_bf16(xc, torch_params)
    assert outc.shape == (4100, 1), outc.shape
    assert jnp.allclose(outc, refc, atol=1e-4, rtol=1e-4)

    print("KERNEL_OK")
</pallas_src>

<mosaic_0001>
module attributes {stable_mosaic.version = 11 : i64} {
  func.func @mlp_kernel(%arg0: i32, %arg1: memref<8x8xf32, #tpu.memory_space<vmem>>, %arg2: memref<8x128xbf16, #tpu.memory_space<vmem>>, %arg3: memref<1x128xf32, #tpu.memory_space<vmem>>, %arg4: memref<128x128xbf16, #tpu.memory_space<vmem>>, %arg5: memref<1x128xf32, #tpu.memory_space<vmem>>, %arg6: memref<128x128xbf16, #tpu.memory_space<vmem>>, %arg7: memref<1x128xf32, #tpu.memory_space<vmem>>, %arg8: memref<8x128xbf16, #tpu.memory_space<vmem>>, %arg9: memref<1x1xf32, #tpu.memory_space<smem>>, %arg10: memref<1x1x8xf32, #tpu.memory_space<vmem>>) attributes {dimension_semantics = [#tpu.dimension_semantics<parallel>], iteration_bounds = array<i64: 1>, scalar_prefetch = 0 : i64, scratch_operands = 0 : i64, tpu.core_type = #tpu.core_type<tc>, window_params = [{transform_indices = @transform_0, window_bounds = array<i64: 8, 8>}, {pipeline_mode = #tpu.pipeline_mode<synchronous>, transform_indices = @transform_1, window_bounds = array<i64: 8, 128>}, {pipeline_mode = #tpu.pipeline_mode<synchronous>, transform_indices = @transform_2, window_bounds = array<i64: 1, 128>}, {pipeline_mode = #tpu.pipeline_mode<synchronous>, transform_indices = @transform_3, window_bounds = array<i64: 128, 128>}, {pipeline_mode = #tpu.pipeline_mode<synchronous>, transform_indices = @transform_4, window_bounds = array<i64: 1, 128>}, {pipeline_mode = #tpu.pipeline_mode<synchronous>, transform_indices = @transform_5, window_bounds = array<i64: 128, 128>}, {pipeline_mode = #tpu.pipeline_mode<synchronous>, transform_indices = @transform_6, window_bounds = array<i64: 1, 128>}, {pipeline_mode = #tpu.pipeline_mode<synchronous>, transform_indices = @transform_7, window_bounds = array<i64: 8, 128>}, {transform_indices = @transform_8, window_bounds = array<i64: 1, 1>}, {transform_indices = @transform_9, window_bounds = array<i64: 1, 1, 8>}]} {
    %c0 = arith.constant 0 : index
    %c0_0 = arith.constant 0 : index
    %0 = vector.load %arg1[%c0, %c0_0] : memref<8x8xf32, #tpu.memory_space<vmem>>, vector<8x8xf32>
    %1 = arith.truncf %0 : vector<8x8xf32> to vector<8x8xbf16>
    %c0_1 = arith.constant 0 : index
    %c0_2 = arith.constant 0 : index
    %2 = vector.load %arg3[%c0_1, %c0_2] : memref<1x128xf32, #tpu.memory_space<vmem>>, vector<1x128xf32>
    %c0_3 = arith.constant 0 : index
    %c0_4 = arith.constant 0 : index
    %3 = vector.load %arg5[%c0_3, %c0_4] : memref<1x128xf32, #tpu.memory_space<vmem>>, vector<1x128xf32>
    %c0_5 = arith.constant 0 : index
    %c0_6 = arith.constant 0 : index
    %4 = vector.load %arg7[%c0_5, %c0_6] : memref<1x128xf32, #tpu.memory_space<vmem>>, vector<1x128xf32>
    %c0_7 = arith.constant 0 : index
    %c0_8 = arith.constant 0 : index
    %5 = vector.load %arg2[%c0_7, %c0_8] : memref<8x128xbf16, #tpu.memory_space<vmem>>, vector<8x128xbf16>
    %cst = arith.constant dense<0.000000e+00> : vector<8x128xf32>
    %6 = tpu.matmul %1, %5, %cst {dimension_numbers = #tpu.dot_dimension_numbers<[1], [0], [0], [1], [0, 0, 1, 1], [], []>} : vector<8x8xbf16>, vector<8x128xbf16>, vector<8x128xf32> -> vector<8x128xf32>
    %7 = vector.broadcast %2 : vector<1x128xf32> to vector<8x128xf32>
    %8 = arith.addf %6, %7 : vector<8x128xf32>
    %cst_9 = arith.constant 0.000000e+00 : f32
    %9 = vector.broadcast %cst_9 : f32 to vector<8x128xf32>
    %10 = arith.maximumf %8, %9 : vector<8x128xf32>
    %11 = arith.truncf %10 : vector<8x128xf32> to vector<8x128xbf16>
    %c0_10 = arith.constant 0 : index
    %c0_11 = arith.constant 0 : index
    %12 = vector.load %arg4[%c0_10, %c0_11] : memref<128x128xbf16, #tpu.memory_space<vmem>>, vector<128x128xbf16>
    %cst_12 = arith.constant dense<0.000000e+00> : vector<8x128xf32>
    %13 = tpu.matmul %11, %12, %cst_12 {dimension_numbers = #tpu.dot_dimension_numbers<[1], [0], [0], [1], [0, 0, 1, 1], [], []>} : vector<8x128xbf16>, vector<128x128xbf16>, vector<8x128xf32> -> vector<8x128xf32>
    %14 = vector.broadcast %3 : vector<1x128xf32> to vector<8x128xf32>
    %15 = arith.addf %13, %14 : vector<8x128xf32>
    %cst_13 = arith.constant 0.000000e+00 : f32
    %16 = vector.broadcast %cst_13 : f32 to vector<8x128xf32>
    %17 = arith.maximumf %15, %16 : vector<8x128xf32>
    %18 = arith.truncf %17 : vector<8x128xf32> to vector<8x128xbf16>
    %c0_14 = arith.constant 0 : index
    %c0_15 = arith.constant 0 : index
    %19 = vector.load %arg6[%c0_14, %c0_15] : memref<128x128xbf16, #tpu.memory_space<vmem>>, vector<128x128xbf16>
    %cst_16 = arith.constant dense<0.000000e+00> : vector<8x128xf32>
    %20 = tpu.matmul %18, %19, %cst_16 {dimension_numbers = #tpu.dot_dimension_numbers<[1], [0], [0], [1], [0, 0, 1, 1], [], []>} : vector<8x128xbf16>, vector<128x128xbf16>, vector<8x128xf32> -> vector<8x128xf32>
    %21 = vector.broadcast %4 : vector<1x128xf32> to vector<8x128xf32>
    %22 = arith.addf %20, %21 : vector<8x128xf32>
    %cst_17 = arith.constant 0.000000e+00 : f32
    %23 = vector.broadcast %cst_17 : f32 to vector<8x128xf32>
    %24 = arith.maximumf %22, %23 : vector<8x128xf32>
    %25 = arith.truncf %24 : vector<8x128xf32> to vector<8x128xbf16>
    %c0_18 = arith.constant 0 : index
    %c0_19 = arith.constant 0 : index
    %26 = vector.load %arg8[%c0_18, %c0_19] : memref<8x128xbf16, #tpu.memory_space<vmem>>, vector<8x128xbf16>
    %cst_20 = arith.constant dense<0.000000e+00> : vector<8x8xf32>
    %27 = tpu.matmul %26, %25, %cst_20 {dimension_numbers = #tpu.dot_dimension_numbers<[1], [1], [0], [0], [0, 0, 1, 0], [], []>} : vector<8x128xbf16>, vector<8x128xbf16>, vector<8x8xf32> -> vector<8x8xf32>
    %28 = vector.extract_strided_slice %27 {offsets = [0, 0], sizes = [1, 8], strides = [1, 1]} : vector<8x8xf32> to vector<1x8xf32>
    %c0_21 = arith.constant 0 : index
    %c0_22 = arith.constant 0 : index
    %29 = memref.load %arg9[%c0_21, %c0_22] : memref<1x1xf32, #tpu.memory_space<smem>>
    %30 = vector.broadcast %29 : f32 to vector<1x8xf32>
    %31 = arith.addf %28, %30 : vector<1x8xf32>
    %32 = vector.shape_cast %31 : vector<1x8xf32> to vector<1x1x8xf32>
    %c0_23 = arith.constant 0 : index
    %c0_24 = arith.constant 0 : index
    %c0_25 = arith.constant 0 : index
    %33 = vector.load %arg10[%c0_23, %c0_24, %c0_25] : memref<1x1x8xf32, #tpu.memory_space<vmem>>, vector<1x1x8xf32>
    tpu.vector_store %arg10[%c0_23, %c0_24, %c0_25], %32 {strides = array<i32>} : memref<1x1x8xf32, #tpu.memory_space<vmem>>, vector<1x1x8xf32>,
    return
  }
  func.func @transform_0(%arg0: i32) -> (i32, i32) {
    %c0_i32 = arith.constant 0 : i32
    %c0_i32_0 = arith.constant 0 : i32
    return %arg0, %c0_i32 : i32, i32
  }
  func.func @transform_1(%arg0: i32) -> (i32, i32) {
    %c0_i32 = arith.constant 0 : i32
    %c0_i32_0 = arith.constant 0 : i32
    %c0_i32_1 = arith.constant 0 : i32
    return %c0_i32, %c0_i32_0 : i32, i32
  }
  func.func @transform_2(%arg0: i32) -> (i32, i32) {
    %c0_i32 = arith.constant 0 : i32
    %c0_i32_0 = arith.constant 0 : i32
    %c0_i32_1 = arith.constant 0 : i32
    return %c0_i32, %c0_i32_0 : i32, i32
  }
  func.func @transform_3(%arg0: i32) -> (i32, i32) {
    %c0_i32 = arith.constant 0 : i32
    %c0_i32_0 = arith.constant 0 : i32
    %c0_i32_1 = arith.constant 0 : i32
    return %c0_i32, %c0_i32_0 : i32, i32
  }
  func.func @transform_4(%arg0: i32) -> (i32, i32) {
    %c0_i32 = arith.constant 0 : i32
    %c0_i32_0 = arith.constant 0 : i32
    %c0_i32_1 = arith.constant 0 : i32
    return %c0_i32, %c0_i32_0 : i32, i32
  }
  func.func @transform_5(%arg0: i32) -> (i32, i32) {
    %c0_i32 = arith.constant 0 : i32
    %c0_i32_0 = arith.constant 0 : i32
    %c0_i32_1 = arith.constant 0 : i32
    return %c0_i32, %c0_i32_0 : i32, i32
  }
  func.func @transform_6(%arg0: i32) -> (i32, i32) {
    %c0_i32 = arith.constant 0 : i32
    %c0_i32_0 = arith.constant 0 : i32
    %c0_i32_1 = arith.constant 0 : i32
    return %c0_i32, %c0_i32_0 : i32, i32
  }
  func.func @transform_7(%arg0: i32) -> (i32, i32) {
    %c0_i32 = arith.constant 0 : i32
    %c0_i32_0 = arith.constant 0 : i32
    %c0_i32_1 = arith.constant 0 : i32
    return %c0_i32, %c0_i32_0 : i32, i32
  }
  func.func @transform_8(%arg0: i32) -> (i32, i32) {
    %c0_i32 = arith.constant 0 : i32
    %c0_i32_0 = arith.constant 0 : i32
    %c0_i32_1 = arith.constant 0 : i32
    return %c0_i32, %c0_i32_0 : i32, i32
  }
  func.func @transform_9(%arg0: i32) -> (i32, i32, i32) {
    %c0_i32 = arith.constant 0 : i32
    %c0_i32_0 = arith.constant 0 : i32
    %c0_i32_1 = arith.constant 0 : i32
    return %arg0, %c0_i32, %c0_i32_0 : i32, i32, i32
  }
}

</mosaic_0001>

<llo_original>
// kernel: tpu_custom_call.1
$region0: #{tpu_custom_call.1}
  #allocation0 [shape = 'u32[]', space=smem, size = 0x4, offset = 0x4, fixed_abs, tag = 'smem constant byte address 0x4 - core index']
  #allocation1 [shape = 'u32[144,128]{1,0:T(1,128)}', space=vmem, size = 0x12000, scoped, tag = 'internal scratch']
  #allocation2 [shape = 'f32[1,1]{1,0:T(1,128)S(6)}', space=smem, size = 0x200, scoped, tag = 'scoped memory for tpu_custom_call.1']
  %s0 = inlined_call_operand.hbm [shape: f32[8,8], index: 0, kind: input, shape index: {}]
  %s1 = inlined_call_operand.vmem [shape: bf16[8,128], index: 1, kind: input, shape index: {}]
  %s2 = inlined_call_operand.vmem [shape: f32[1,128], index: 2, kind: input, shape index: {}]
  %s3 = inlined_call_operand.hbm [shape: bf16[128,128], index: 3, kind: input, shape index: {}]
  %s4 = inlined_call_operand.vmem [shape: f32[1,128], index: 4, kind: input, shape index: {}]
  %s5 = inlined_call_operand.hbm [shape: bf16[128,128], index: 5, kind: input, shape index: {}]
  %s6 = inlined_call_operand.vmem [shape: f32[1,128], index: 6, kind: input, shape index: {}]
  %s7 = inlined_call_operand.vmem [shape: bf16[8,128], index: 7, kind: input, shape index: {}]
  %s8 = inlined_call_operand.<no memory space> [shape: f32[1,1], index: 8, kind: input, shape index: {}]
  %s9 = inlined_call_operand.hbm [shape: f32[1,1,8], index: 9, kind: output, shape index: {}]
  %s10 = sld [smem:[#allocation0]]
  $region58: #{tpu_custom_call.1} parent=0
    _
  %s12 = ssub.s32 1, %s10
  %s13 = scalar_select 0, %s12, %s10
  %14 = sst [smem:[#allocation2]] %s8
  $region1: #{tpu_custom_call.1} parent=0
    #allocation3 [shape = 'u8[4096]{0}', space=vmem, size = 0x1000, scoped, tag = 'input window, operand 0, single buffered']
    #allocation4 [shape = 's32[1]{0}', space=sflag, size = 0x4, scoped, tag = 'scoped memory for tpu_custom_call.1']
    #allocation5 [shape = 's32[1]{0}', space=sflag, size = 0x4, scoped, tag = 'scoped memory for tpu_custom_call.1']
    #allocation6 [shape = 'u8[32768]{0}', space=vmem, size = 0x8000, scoped, tag = 'input window, operand 3, single buffered']
    #allocation7 [shape = 's32[1]{0}', space=sflag, size = 0x4, scoped, tag = 'scoped memory for tpu_custom_call.1']
    #allocation8 [shape = 'u8[32768]{0}', space=vmem, size = 0x8000, scoped, tag = 'input window, operand 5, single buffered']
    #allocation9 [shape = 'u8[512]{0}', space=vmem, size = 0x400, scoped, tag = 'output window, operand 0, single buffered']
    %15 = vsyncpa [#allocation4], 0
    %16 = vsyncpa [#allocation7], 0
    %17 = vsyncpa [#allocation5], 0
    // Predicated region
    $region2: #{tpu_custom_call.1} parent=1 // pred_check
      _
    $region3: #{tpu_custom_call.1} parent=1 // pred_check_branch
      %19 = sbr.rel (0) target = $region5
    $region4: #{tpu_custom_call.1} parent=1 // pred_region
      %s21 = ssub.s32 128, 128
      %22 = vsyncadd [#allocation4], %s21
      %s24 = sshll.u32 [#allocation3], 4
      %s25 = int_to_ptr.vmem [resolvable:$true] %s24
      %27 = dma.hbm_to_vmem [thread:$0]  %s0, 128, %s25, [#allocation4]
    $region5: #{tpu_custom_call.1} parent=1 // pred_fallthru
      _
    // Predicated region
    $region6: #{tpu_custom_call.1} parent=1 // pred_check
      _
    $region7: #{tpu_custom_call.1} parent=1 // pred_check_branch
      %29 = sbr.rel (0) target = $region9
    $region8: #{tpu_custom_call.1} parent=1 // pred_region
      _
    $region9: #{tpu_custom_call.1} parent=1 // pred_fallthru
      _
    // Predicated region
    $region10: #{tpu_custom_call.1} parent=1 // pred_check
      _
    $region11: #{tpu_custom_call.1} parent=1 // pred_check_branch
      %31 = sbr.rel (0) target = $region13
    $region12: #{tpu_custom_call.1} parent=1 // pred_region
      _
    $region13: #{tpu_custom_call.1} parent=1 // pred_fallthru
      _
    // Predicated region
    $region14: #{tpu_custom_call.1} parent=1 // pred_check
      _
    $region15: #{tpu_custom_call.1} parent=1 // pred_check_branch
      %33 = sbr.rel (0) target = $region17
    $region16: #{tpu_custom_call.1} parent=1 // pred_region
      %s35 = ssub.s32 1024, 1024
      %36 = vsyncadd [#allocation7], %s35
      %s37 = sshll.u32 [#allocation6], 4
      %s38 = int_to_ptr.vmem [resolvable:$true] %s37
      %43 = dma.hbm_to_vmem [thread:$0]  %s3, 1024, %s38, [#allocation7], 64, 64, 4
    $region17: #{tpu_custom_call.1} parent=1 // pred_fallthru
      _
    // Predicated region
    $region18: #{tpu_custom_call.1} parent=1 // pred_check
      _
    $region19: #{tpu_custom_call.1} parent=1 // pred_check_branch
      %45 = sbr.rel (0) target = $region21
    $region20: #{tpu_custom_call.1} parent=1 // pred_region
      _
    $region21: #{tpu_custom_call.1} parent=1 // pred_fallthru
      _
    // Predicated region
    $region22: #{tpu_custom_call.1} parent=1 // pred_check
      _
    $region23: #{tpu_custom_call.1} parent=1 // pred_check_branch
      %47 = sbr.rel (0) target = $region25
    $region24: #{tpu_custom_call.1} parent=1 // pred_region
      %s49 = ssub.s32 1024, 1024
      %50 = vsyncadd [#allocation7], %s49
      %s51 = sshll.u32 [#allocation8], 4
      %s52 = int_to_ptr.vmem [resolvable:$true] %s51
      %57 = dma.hbm_to_vmem [thread:$0]  %s5, 1024, %s52, [#allocation7], 64, 64, 4
    $region25: #{tpu_custom_call.1} parent=1 // pred_fallthru
      _
    // Predicated region
    $region26: #{tpu_custom_call.1} parent=1 // pred_check
      _
    $region27: #{tpu_custom_call.1} parent=1 // pred_check_branch
      %59 = sbr.rel (0) target = $region29
    $region28: #{tpu_custom_call.1} parent=1 // pred_region
      _
    $region29: #{tpu_custom_call.1} parent=1 // pred_fallthru
      _
    // Predicated region
    $region30: #{tpu_custom_call.1} parent=1 // pred_check
      _
    $region31: #{tpu_custom_call.1} parent=1 // pred_check_branch
      %61 = sbr.rel (0) target = $region33
    $region32: #{tpu_custom_call.1} parent=1 // pred_region
      _
    $region33: #{tpu_custom_call.1} parent=1 // pred_fallthru
      _
    // Predicated region
    $region34: #{tpu_custom_call.1} parent=1 // pred_check
      _
    $region35: #{tpu_custom_call.1} parent=1 // pred_check_branch
      %63 = sbr.rel (0) target = $region37
    $region36: #{tpu_custom_call.1} parent=1 // pred_region
      _
    $region37: #{tpu_custom_call.1} parent=1 // pred_fallthru
      _
    // Predicated region
    $region38: #{tpu_custom_call.1} parent=1 // pred_check
      _
    $region39: #{tpu_custom_call.1} parent=1 // pred_check_branch
      %65 = sbr.rel (0) target = $region41
    $region40: #{tpu_custom_call.1} parent=1 // pred_region
      %66 = dma.done [#allocation4], 128
    $region41: #{tpu_custom_call.1} parent=1 // pred_fallthru
      _
    // Predicated region
    $region42: #{tpu_custom_call.1} parent=1 // pred_check
      _
    $region43: #{tpu_custom_call.1} parent=1 // pred_check_branch
      %68 = sbr.rel (0) target = $region45
    $region44: #{tpu_custom_call.1} parent=1 // pred_region
      %69 = dma.done [#allocation7], 1024
    $region45: #{tpu_custom_call.1} parent=1 // pred_fallthru
      _
    // Predicated region
    $region46: #{tpu_custom_call.1} parent=1 // pred_check
      _
    $region47: #{tpu_custom_call.1} parent=1 // pred_check_branch
      %71 = sbr.rel (0) target = $region49
    $region48: #{tpu_custom_call.1} parent=1 // pred_region
      %72 = dma.done [#allocation7], 1024
    $region49: #{tpu_custom_call.1} parent=1 // pred_fallthru
      _
    %v74 = vld [vmem:[#allocation3] sm:$0xff]
    %v75 = vpack.c.bf16 %v74, %v74
    %v76 = vld [vmem:[%s2] sm:$0x1]
    %v77 = vld [vmem:[%s4] sm:$0x1]
    %v78 = vld [vmem:[%s6] sm:$0x1]
    %v79 = vld [vmem:[%s1] sm:$0xf]
    %v81 = vlaneseq
    %v82 = vshrl.u32 %v81, 7
    %v83 = vsub.s32 0, %v82
    %v84 = vrot.slane %v76, %v83
    %vm86 = vcmask 64512
    %v88 = vsel %vm86, %v75, 0
    %vm90 = vcmask 1043456
    %v92 = vsel %vm90, %v79, 0
    %94 = vmatprep.subr.bf16.mxu0 0
    %95 = vmatpush1.bf16.msra.mxu0 %v92
    %96 = vmatprep.subr.bf16.mxu0 0
    %97 = vmatpush1.bf16.msra.mxu0 0
    %98 = vmatprep.subr.bf16.mxu0 0
    %99 = vmatpush1.bf16.msra.mxu0 0
    %100 = vmatprep.subr.bf16.mxu0 0
    %101 = vmatpush1.bf16.msra.mxu0 0
    %102 = vmatprep.subr.bf16.mxu0 0
    %103 = vmatpush1.bf16.msra.mxu0 0
    %104 = vmatprep.subr.bf16.mxu0 0
    %105 = vmatpush1.bf16.msra.mxu0 0
    %106 = vmatprep.subr.bf16.mxu0 0
    %107 = vmatpush1.bf16.msra.mxu0 0
    %108 = vmatprep.subr.bf16.mxu0 0
    %109 = vmatpush1.bf16.msra.mxu0 0
    %110 = vmatprep.subr.bf16.mxu0 0
    %111 = vmatpush1.bf16.msra.mxu0 0
    %112 = vmatprep.subr.bf16.mxu0 0
    %113 = vmatpush1.bf16.msra.mxu0 0
    %114 = vmatprep.subr.bf16.mxu0 0
    %115 = vmatpush1.bf16.msra.mxu0 0
    %116 = vmatprep.subr.bf16.mxu0 0
    %117 = vmatpush1.bf16.msra.mxu0 0
    %118 = vmatprep.subr.bf16.mxu0 0
    %119 = vmatpush1.bf16.msra.mxu0 0
    %120 = vmatprep.subr.bf16.mxu0 0
    %121 = vmatpush1.bf16.msra.mxu0 0
    %122 = vmatprep.subr.bf16.mxu0 0
    %123 = vmatpush1.bf16.msra.mxu0 0
    %124 = vmatprep.subr.bf16.mxu0 0
    %125 = vmatpush1.bf16.msra.mxu0 0
    %126 = vmatprep.mubr.bf16.mxu0 0
    %127 = vmatmul.mubr.bf16.gmra.mrb[0].mxu0 %v88
    %v128 = vpop.f32.mrb[0].mxu0
    %v129 = vadd.f32 %v84, %v128
    %v130 = vpop.f32.mrb[0].mxu0
    %v131 = vpop.f32.mrb[0].mxu0
    %v132 = vpop.f32.mrb[0].mxu0
    %133 = vdwg.mxu0
    %v134 = vmax.f32 %v129, 0.0
    %v135 = vpack.c.bf16 %v134, %v134
    %v136 = vld [vmem:[#allocation6] sm:$0xf]
    %v137 = vld [vmem:[#allocation6 + $0x4] sm:$0xf]
    %v138 = vld [vmem:[#allocation6 + $0x8] sm:$0xf]
    %v139 = vld [vmem:[#allocation6 + $0xc] sm:$0xf]
    %v140 = vld [vmem:[#allocation6 + $0x10] sm:$0xf]
    %v141 = vld [vmem:[#allocation6 + $0x14] sm:$0xf]
    %v142 = vld [vmem:[#allocation6 + $0x18] sm:$0xf]
    %v143 = vld [vmem:[#allocation6 + $0x1c] sm:$0xf]
    %v144 = vld [vmem:[#allocation6 + $0x20] sm:$0xf]
    %v145 = vld [vmem:[#allocation6 + $0x24] sm:$0xf]
    %v146 = vld [vmem:[#allocation6 + $0x28] sm:$0xf]
    %v147 = vld [vmem:[#allocation6 + $0x2c] sm:$0xf]
    %v148 = vld [vmem:[#allocation6 + $0x30] sm:$0xf]
    %v149 = vld [vmem:[#allocation6 + $0x34] sm:$0xf]
    %v150 = vld [vmem:[#allocation6 + $0x38] sm:$0xf]
    %v151 = vld [vmem:[#allocation6 + $0x3c] sm:$0xf]
    %v153 = vlaneseq
    %v154 = vshrl.u32 %v153, 7
    %v155 = vsub.s32 0, %v154
    %v156 = vrot.slane %v77, %v155
    %v174 = vunpack.c.l.b16 %v136
    %v175 = vunpack.c.l.b16 %v137
    %v176 = vunpack.c.l.b16 %v138
    %v177 = vunpack.c.l.b16 %v139
    %v178 = vunpack.c.l.b16 %v140
    %v179 = vunpack.c.l.b16 %v141
    %v180 = vunpack.c.l.b16 %v142
    %v181 = vunpack.c.l.b16 %v143
    %v182 = vunpack.c.l.b16 %v144
    %v183 = vunpack.c.l.b16 %v145
    %v184 = vunpack.c.l.b16 %v146
    %v185 = vunpack.c.l.b16 %v147
    %v186 = vunpack.c.l.b16 %v148
    %v187 = vunpack.c.l.b16 %v149
    %v188 = vunpack.c.l.b16 %v150
    %v189 = vunpack.c.l.b16 %v151
    %v190 = vpack.c.b16 %v175, %v174
    %v191 = vpack.c.b16 %v177, %v176
    %v192 = vpack.c.b16 %v179, %v178
    %v193 = vpack.c.b16 %v181, %v180
    %v194 = vpack.c.b16 %v183, %v182
    %v195 = vpack.c.b16 %v185, %v184
    %v196 = vpack.c.b16 %v187, %v186
    %v197 = vpack.c.b16 %v189, %v188
    %206 = vmatprep.subr.bf16.mxu0 0
    %207 = vmatpush1.bf16.msra.mxu0 %v190
    %208 = vmatprep.subr.bf16.mxu0 0
    %209 = vmatpush1.bf16.msra.mxu0 %v191
    %210 = vmatprep.subr.bf16.mxu0 0
    %211 = vmatpush1.bf16.msra.mxu0 %v192
    %212 = vmatprep.subr.bf16.mxu0 0
    %213 = vmatpush1.bf16.msra.mxu0 %v193
    %214 = vmatprep.subr.bf16.mxu0 0
    %215 = vmatpush1.bf16.msra.mxu0 %v194
    %216 = vmatprep.subr.bf16.mxu0 0
    %217 = vmatpush1.bf16.msra.mxu0 %v195
    %218 = vmatprep.subr.bf16.mxu0 0
    %219 = vmatpush1.bf16.msra.mxu0 %v196
    %220 = vmatprep.subr.bf16.mxu0 0
    %221 = vmatpush1.bf16.msra.mxu0 %v197
    %222 = vmatprep.subr.bf16.mxu0 0
    %223 = vmatpush1.bf16.msra.mxu0 0
    %224 = vmatprep.subr.bf16.mxu0 0
    %225 = vmatpush1.bf16.msra.mxu0 0
    %226 = vmatprep.subr.bf16.mxu0 0
    %227 = vmatpush1.bf16.msra.mxu0 0
    %228 = vmatprep.subr.bf16.mxu0 0
    %229 = vmatpush1.bf16.msra.mxu0 0
    %230 = vmatprep.subr.bf16.mxu0 0
    %231 = vmatpush1.bf16.msra.mxu0 0
    %232 = vmatprep.subr.bf16.mxu0 0
    %233 = vmatpush1.bf16.msra.mxu0 0
    %234 = vmatprep.subr.bf16.mxu0 0
    %235 = vmatpush1.bf16.msra.mxu0 0
    %236 = vmatprep.subr.bf16.mxu0 0
    %237 = vmatpush1.bf16.msra.mxu0 0
    %238 = vmatprep.mubr.bf16.mxu0 0
    %239 = vmatmul.mubr.bf16.gmra.mrb[0].mxu0 %v135
    %v240 = vpop.f32.mrb[0].mxu0
    %v241 = vadd.f32 %v156, %v240
    %v242 = vpop.f32.mrb[0].mxu0
    %v243 = vpop.f32.mrb[0].mxu0
    %v244 = vpop.f32.mrb[0].mxu0
    %245 = vdwg.mxu0
    %v246 = vmax.f32 %v241, 0.0
    %v247 = vpack.c.bf16 %v246, %v246
    %v248 = vld [vmem:[#allocation8] sm:$0xf]
    %v249 = vld [vmem:[#allocation8 + $0x4] sm:$0xf]
    %v250 = vld [vmem:[#allocation8 + $0x8] sm:$0xf]
    %v251 = vld [vmem:[#allocation8 + $0xc] sm:$0xf]
    %v252 = vld [vmem:[#allocation8 + $0x10] sm:$0xf]
    %v253 = vld [vmem:[#allocation8 + $0x14] sm:$0xf]
    %v254 = vld [vmem:[#allocation8 + $0x18] sm:$0xf]
    %v255 = vld [vmem:[#allocation8 + $0x1c] sm:$0xf]
    %v256 = vld [vmem:[#allocation8 + $0x20] sm:$0xf]
    %v257 = vld [vmem:[#allocation8 + $0x24] sm:$0xf]
    %v258 = vld [vmem:[#allocation8 + $0x28] sm:$0xf]
    %v259 = vld [vmem:[#allocation8 + $0x2c] sm:$0xf]
    %v260 = vld [vmem:[#allocation8 + $0x30] sm:$0xf]
    %v261 = vld [vmem:[#allocation8 + $0x34] sm:$0xf]
    %v262 = vld [vmem:[#allocation8 + $0x38] sm:$0xf]
    %v263 = vld [vmem:[#allocation8 + $0x3c] sm:$0xf]
    %v265 = vlaneseq
    %v266 = vshrl.u32 %v265, 7
    %v267 = vsub.s32 0, %v266
    %v268 = vrot.slane %v78, %v267
    %v286 = vunpack.c.l.b16 %v248
    %v287 = vunpack.c.l.b16 %v249
    %v288 = vunpack.c.l.b16 %v250
    %v289 = vunpack.c.l.b16 %v251
    %v290 = vunpack.c.l.b16 %v252
    %v291 = vunpack.c.l.b16 %v253
    %v292 = vunpack.c.l.b16 %v254
    %v293 = vunpack.c.l.b16 %v255
    %v294 = vunpack.c.l.b16 %v256
    %v295 = vunpack.c.l.b16 %v257
    %v296 = vunpack.c.l.b16 %v258
    %v297 = vunpack.c.l.b16 %v259
    %v298 = vunpack.c.l.b16 %v260
    %v299 = vunpack.c.l.b16 %v261
    %v300 = vunpack.c.l.b16 %v262
    %v301 = vunpack.c.l.b16 %v263
    %v302 = vpack.c.b16 %v287, %v286
    %v303 = vpack.c.b16 %v289, %v288
    %v304 = vpack.c.b16 %v291, %v290
    %v305 = vpack.c.b16 %v293, %v292
    %v306 = vpack.c.b16 %v295, %v294
    %v307 = vpack.c.b16 %v297, %v296
    %v308 = vpack.c.b16 %v299, %v298
    %v309 = vpack.c.b16 %v301, %v300
    %318 = vmatprep.subr.bf16.mxu0 0
    %319 = vmatpush1.bf16.msra.mxu0 %v302
    %320 = vmatprep.subr.bf16.mxu0 0
    %321 = vmatpush1.bf16.msra.mxu0 %v303
    %322 = vmatprep.subr.bf16.mxu0 0
    %323 = vmatpush1.bf16.msra.mxu0 %v304
    %324 = vmatprep.subr.bf16.mxu0 0
    %325 = vmatpush1.bf16.msra.mxu0 %v305
    %326 = vmatprep.subr.bf16.mxu0 0
    %327 = vmatpush1.bf16.msra.mxu0 %v306
    %328 = vmatprep.subr.bf16.mxu0 0
    %329 = vmatpush1.bf16.msra.mxu0 %v307
    %330 = vmatprep.subr.bf16.mxu0 0
    %331 = vmatpush1.bf16.msra.mxu0 %v308
    %332 = vmatprep.subr.bf16.mxu0 0
    %333 = vmatpush1.bf16.msra.mxu0 %v309
    %334 = vmatprep.subr.bf16.mxu0 0
    %335 = vmatpush1.bf16.msra.mxu0 0
    %336 = vmatprep.subr.bf16.mxu0 0
    %337 = vmatpush1.bf16.msra.mxu0 0
    %338 = vmatprep.subr.bf16.mxu0 0
    %339 = vmatpush1.bf16.msra.mxu0 0
    %340 = vmatprep.subr.bf16.mxu0 0
    %341 = vmatpush1.bf16.msra.mxu0 0
    %342 = vmatprep.subr.bf16.mxu0 0
    %343 = vmatpush1.bf16.msra.mxu0 0
    %344 = vmatprep.subr.bf16.mxu0 0
    %345 = vmatpush1.bf16.msra.mxu0 0
    %346 = vmatprep.subr.bf16.mxu0 0
    %347 = vmatpush1.bf16.msra.mxu0 0
    %348 = vmatprep.subr.bf16.mxu0 0
    %349 = vmatpush1.bf16.msra.mxu0 0
    %350 = vmatprep.mubr.bf16.mxu0 0
    %351 = vmatmul.mubr.bf16.gmra.mrb[0].mxu0 %v247
    %v352 = vpop.f32.mrb[0].mxu0
    %v353 = vadd.f32 %v268, %v352
    %v354 = vpop.f32.mrb[0].mxu0
    %v355 = vpop.f32.mrb[0].mxu0
    %v356 = vpop.f32.mrb[0].mxu0
    %357 = vdwg.mxu0
    %v358 = vmax.f32 %v353, 0.0
    %v359 = vpack.c.bf16 %v358, %v358
    %v360 = vld [vmem:[%s7] sm:$0xf]
    %361 = vmatprep.subr.bf16.mxu0 0
    %362 = vmatpush1.bf16.xpose.msra.mxu0 %v359
    %363 = vmatprep.subr.bf16.mxu0 0
    %364 = vmatpush1.bf16.xpose.msra.mxu0 0
    %365 = vmatprep.subr.bf16.mxu0 0
    %366 = vmatpush1.bf16.xpose.msra.mxu0 0
    %367 = vmatprep.subr.bf16.mxu0 0
    %368 = vmatpush1.bf16.xpose.msra.mxu0 0
    %369 = vmatprep.subr.bf16.mxu0 0
    %370 = vmatpush1.bf16.xpose.msra.mxu0 0
    %371 = vmatprep.subr.bf16.mxu0 0
    %372 = vmatpush1.bf16.xpose.msra.mxu0 0
    %373 = vmatprep.subr.bf16.mxu0 0
    %374 = vmatpush1.bf16.xpose.msra.mxu0 0
    %375 = vmatprep.subr.bf16.mxu0 0
    %376 = vmatpush1.bf16.xpose.msra.mxu0 0
    %377 = vmatprep.subr.bf16.mxu0 0
    %378 = vmatpush1.bf16.xpose.msra.mxu0 0
    %379 = vmatprep.subr.bf16.mxu0 0
    %380 = vmatpush1.bf16.xpose.msra.mxu0 0
    %381 = vmatprep.subr.bf16.mxu0 0
    %382 = vmatpush1.bf16.xpose.msra.mxu0 0
    %383 = vmatprep.subr.bf16.mxu0 0
    %384 = vmatpush1.bf16.xpose.msra.mxu0 0
    %385 = vmatprep.subr.bf16.mxu0 0
    %386 = vmatpush1.bf16.xpose.msra.mxu0 0
    %387 = vmatprep.subr.bf16.mxu0 0
    %388 = vmatpush1.bf16.xpose.msra.mxu0 0
    %389 = vmatprep.subr.bf16.mxu0 0
    %390 = vmatpush1.bf16.xpose.msra.mxu0 0
    %391 = vmatprep.subr.bf16.mxu0 0
    %392 = vmatpush1.bf16.xpose.msra.mxu0 0
    %393 = vmatprep.mubr.bf16.mxu0 0
    %394 = vmatmul.mubr.bf16.gmra.mrb[0].mxu0 %v360
    %v395 = vpop.f32.mrb[0].mxu0
    %v396 = vadd.f32 0.0, %v395
    %v397 = vpop.f32.mrb[0].mxu0
    %v398 = vpop.f32.mrb[0].mxu0
    %v399 = vpop.f32.mrb[0].mxu0
    %400 = vdwg.mxu0
    %s401 = sld [smem:[#allocation2]]
    %v402 = vstv %s401
    %v403 = vadd.f32 %v396, %v402
    %vm404 = vcmask 57344
    %405 = vst.msk [vmem:[#allocation9] sm:$0x1] %vm404, %v403
    // Predicated region
    $region50: #{tpu_custom_call.1} parent=1 // pred_check
      _
    $region51: #{tpu_custom_call.1} parent=1 // pred_check_branch
      %407 = sbr.rel (0) target = $region53
    $region52: #{tpu_custom_call.1} parent=1 // pred_region
      %s409 = ssub.s32 16, 16
      %410 = vsyncadd [#allocation5], %s409
      %s412 = sshll.u32 [#allocation9], 4
      %s413 = int_to_ptr.vmem [resolvable:$true] %s412
      %415 = dma.vmem_to_hbm [thread:$0]  %s413, 16, %s9, [#allocation5]
    $region53: #{tpu_custom_call.1} parent=1 // pred_fallthru
      _
    // Predicated region
    $region54: #{tpu_custom_call.1} parent=1 // pred_check
      _
    $region55: #{tpu_custom_call.1} parent=1 // pred_check_branch
      %417 = sbr.rel (0) target = $region57
    $region56: #{tpu_custom_call.1} parent=1 // pred_region
      %418 = dma.done [#allocation5], 16
    $region57: #{tpu_custom_call.1} parent=1 // pred_fallthru
      _
    %419 = vsyncpa [#allocation4], 1
    %420 = vsyncpa [#allocation7], 1
    %421 = vsyncpa [#allocation5], 1

</llo_original>
